<compile_context>
chip_gen: v7x
topology: tpu7x:2x2x1
jax: 0.10.0
libtpu: 0.0.40
codegen_flags: <defaults>
</compile_context>

<pallas_src>
import jax
import jax.numpy as jnp
import numpy as np
from jax.experimental import pallas as pl
from jax.experimental.pallas import tpu as pltpu


# ---------------------------------------------------------------------------
# Kernel
# ---------------------------------------------------------------------------

def _bnch_matmul_kernel(x_ref, w_ref, b_ref, o_ref):
    """One (K-tile, HW-tile) block: (tk,C) @ (C,tn) matmul + bias add.

    x_ref: (1, C, tn)   activation tile (native NCHW layout, HW flattened)
    w_ref: (1, tk, C)   folded weights (constant across HW tiles)
    b_ref: (1, tk, 1)   folded per-(b,k) bias (f32)
    o_ref: (1, tk, tn)  output tile, lane-dense on HW
    """
    acc = jnp.dot(w_ref[0], x_ref[0], preferred_element_type=jnp.float32)
    o_ref[0] = (acc + b_ref[0]).astype(o_ref.dtype)


# ---------------------------------------------------------------------------
# Wrapper
# ---------------------------------------------------------------------------

def _round_up(v, m):
    return ((v + m - 1) // m) * m


def bn_contrastive_head(x, w, params, *, hw_tile=2048,
                        vmem_budget_bytes=24 << 20):
    """x: (B, C, H, W) image features, w: (B, K, C) text features -> (B, K, H, W)."""
    B, C, H, W = x.shape
    Bw, K, Cw = w.shape
    assert (Bw, Cw) == (B, C), (w.shape, x.shape)
    HW = H * W
    eps = float(params.get("eps", 1e-5))
    out_dtype = x.dtype
    itemsize = jnp.dtype(out_dtype).itemsize

    # ---- weight prep in plain JAX (tiny: B*K*C elementwise + C-reduce) -----
    # Fold eval-mode BN + exp(logit_scale) into per-channel scale / shift,
    # then fold those into the L2-normalized text embeddings.
    bn_scale = params["gamma"] * jax.lax.rsqrt(params["var"] + eps)        # (C,)
    bn_shift = params["beta"] - params["mean"] * bn_scale                  # (C,)
    e = jnp.exp(jnp.asarray(params["logit_scale"], jnp.float32))

    w32 = w.astype(jnp.float32)
    nrm = jnp.sqrt(jnp.sum(w32 * w32, axis=-1, keepdims=True))
    w_n = w32 / jnp.maximum(nrm, 1e-12)                                    # F.normalize eps
    w_eff = (w_n * (bn_scale * e)[None, None, :]).astype(out_dtype)        # (B, K, C)
    bias_eff = (jnp.sum(w_n * (bn_shift * e)[None, None, :], axis=-1,
                        keepdims=True)
                + jnp.asarray(params["bias"], jnp.float32)).astype(jnp.float32)  # (B, K, 1)

    # ---- tile selection (generation-safe VMEM budget) ----------------------
    # K tile: full K for typical heads; 256 (MXU-aligned, multiple of 8) for
    # very large open-vocab class counts to cap the pinned weight block.
    tk = K if K <= 512 else 256
    k_tiles = pl.cdiv(K, tk)

    # Bytes per grid step: double-buffered x block + output block (per lane)
    # plus the (double-buffered) weight/bias blocks.
    w_bytes = 2 * tk * C * itemsize + 2 * tk * 4
    per_lane = 2 * (C + tk) * itemsize
    tn_cap = max(128, (vmem_budget_bytes - w_bytes) // per_lane)
    tn = min(_round_up(max(128, hw_tile), 128), tn_cap, _round_up(HW, 128))
    tn = max(128, (tn // 128) * 128)
    if tn >= HW:
        tn = HW          # single full-extent (possibly non-128-multiple) tile

    # v7x has 2 TensorCores per chip: make sure there are >=2 parallel grid
    # steps so both cores get work on small-feature-map FPN levels.
    if B * k_tiles * pl.cdiv(HW, tn) < 2 and HW > 128:
        tn = max(128, _round_up(pl.cdiv(HW, 2), 128))

    grid = (B, k_tiles, pl.cdiv(HW, tn))

    # Native layout + native dtype: free metadata reshape, no extra HBM pass.
    x2 = x.reshape(B, C, HW)

    out = pl.pallas_call(
        _bnch_matmul_kernel,
        out_shape=jax.ShapeDtypeStruct((B, K, HW), out_dtype),
        grid=grid,
        in_specs=[
            pl.BlockSpec((1, C, tn), lambda b, kq, j: (b, 0, j)),
            pl.BlockSpec((1, tk, C), lambda b, kq, j: (b, kq, 0)),
            pl.BlockSpec((1, tk, 1), lambda b, kq, j: (b, kq, 0)),
        ],
        out_specs=pl.BlockSpec((1, tk, tn), lambda b, kq, j: (b, kq, j)),
        compiler_params=pltpu.CompilerParams(
            dimension_semantics=("parallel", "parallel", "parallel"),
            vmem_limit_bytes=32 << 20),
    )(x2, w_eff, bias_eff)

    return out.reshape(B, K, H, W)


# ---------------------------------------------------------------------------
# Pure-JAX reference (correctness check only)
# ---------------------------------------------------------------------------

def ref_forward(x, w, params):
    eps = float(params.get("eps", 1e-5))
    g, b = params["gamma"], params["beta"]
    m, v = params["mean"], params["var"]
    scale = (g * jax.lax.rsqrt(v + eps))[None, :, None, None]
    x_bn = (x - m[None, :, None, None]) * scale + b[None, :, None, None]
    nrm = jnp.sqrt(jnp.sum(w * w, axis=-1, keepdims=True))
    w_n = w / jnp.maximum(nrm, 1e-12)
    y = jnp.einsum("bchw,bkc->bkhw", x_bn, w_n,
                   precision=jax.lax.Precision.HIGHEST)
    return y * jnp.exp(params["logit_scale"]) + params["bias"]


# ---------------------------------------------------------------------------

if __name__ == "__main__":
    B, C, H, W, K = 2, 32, 16, 16, 8        # embed_dims=32, 8 text queries
    key = jax.random.PRNGKey(0)
    kx, kw, kg, kb, km, kv = jax.random.split(key, 6)

    x = jax.random.normal(kx, (B, C, H, W), jnp.float32)
    w = jax.random.normal(kw, (B, K, C), jnp.float32)

    # Non-trivial (but eval-mode) BN stats so the folding math is exercised.
    params = dict(
        gamma=1.0 + 0.1 * jax.random.normal(kg, (C,), jnp.float32),
        beta=0.1 * jax.random.normal(kb, (C,), jnp.float32),
        mean=0.1 * jax.random.normal(km, (C,), jnp.float32),
        var=0.5 + jax.random.uniform(kv, (C,), jnp.float32),
        eps=1e-5,
        logit_scale=jnp.float32(-1.0),      # module init value
        bias=jnp.float32(0.0),              # module init value
    )

    out = jax.block_until_ready(bn_contrastive_head(x, w, params))
    assert out.shape == (B, K, H, W), out.shape

    ref = jax.block_until_ready(ref_forward(x, w, params))
    np.testing.assert_allclose(np.asarray(out), np.asarray(ref),
                               rtol=1e-3, atol=1e-4)
    print("KERNEL_OK")
</pallas_src>

<mosaic_0001>
module attributes {stable_mosaic.version = 11 : i64} {
  func.func @_bnch_matmul_kernel(%arg0: i32, %arg1: i32, %arg2: i32, %arg3: memref<1x32x256xf32, #tpu.memory_space<vmem>>, %arg4: memref<1x8x32xf32, #tpu.memory_space<vmem>>, %arg5: memref<1x8x1xf32, #tpu.memory_space<vmem>>, %arg6: memref<1x8x256xf32, #tpu.memory_space<vmem>>) attributes {dimension_semantics = [#tpu.dimension_semantics<parallel>, #tpu.dimension_semantics<parallel>, #tpu.dimension_semantics<parallel>], iteration_bounds = array<i64: 2, 1, 1>, scalar_prefetch = 0 : i64, scratch_operands = 0 : i64, tpu.core_type = #tpu.core_type<tc>, window_params = [{transform_indices = @transform_0, window_bounds = array<i64: 1, 32, 256>}, {transform_indices = @transform_1, window_bounds = array<i64: 1, 8, 32>}, {transform_indices = @transform_2, window_bounds = array<i64: 1, 8, 1>}, {transform_indices = @transform_3, window_bounds = array<i64: 1, 8, 256>}]} {
    %c0 = arith.constant 0 : index
    %c0_0 = arith.constant 0 : index
    %c0_1 = arith.constant 0 : index
    %0 = vector.load %arg4[%c0, %c0_0, %c0_1] : memref<1x8x32xf32, #tpu.memory_space<vmem>>, vector<1x8x32xf32>
    %1 = vector.shape_cast %0 : vector<1x8x32xf32> to vector<8x32xf32>
    %c0_2 = arith.constant 0 : index
    %c0_3 = arith.constant 0 : index
    %c0_4 = arith.constant 0 : index
    %2 = vector.load %arg3[%c0_2, %c0_3, %c0_4] : memref<1x32x256xf32, #tpu.memory_space<vmem>>, vector<1x32x256xf32>
    %3 = vector.shape_cast %2 : vector<1x32x256xf32> to vector<32x256xf32>
    %cst = arith.constant dense<0.000000e+00> : vector<8x256xf32>
    %4 = tpu.matmul %1, %3, %cst {dimension_numbers = #tpu.dot_dimension_numbers<[1], [0], [0], [1], [0, 0, 1, 1], [], []>} : vector<8x32xf32>, vector<32x256xf32>, vector<8x256xf32> -> vector<8x256xf32>
    %c0_5 = arith.constant 0 : index
    %c0_6 = arith.constant 0 : index
    %c0_7 = arith.constant 0 : index
    %5 = vector.load %arg5[%c0_5, %c0_6, %c0_7] : memref<1x8x1xf32, #tpu.memory_space<vmem>>, vector<1x8x1xf32>
    %6 = vector.shape_cast %5 : vector<1x8x1xf32> to vector<8x1xf32>
    %7 = vector.broadcast %6 : vector<8x1xf32> to vector<8x256xf32>
    %8 = arith.addf %4, %7 : vector<8x256xf32>
    %c0_8 = arith.constant 0 : index
    %c0_9 = arith.constant 0 : index
    %c0_10 = arith.constant 0 : index
    %9 = vector.load %arg6[%c0_8, %c0_9, %c0_10] : memref<1x8x256xf32, #tpu.memory_space<vmem>>, vector<1x8x256xf32>
    %10 = vector.shape_cast %9 : vector<1x8x256xf32> to vector<8x256xf32>
    %11 = vector.shape_cast %8 : vector<8x256xf32> to vector<1x8x256xf32>
    tpu.vector_store %arg6[%c0_8, %c0_9, %c0_10], %11 {strides = array<i32>} : memref<1x8x256xf32, #tpu.memory_space<vmem>>, vector<1x8x256xf32>,
    return
  }
  func.func @transform_0(%arg0: i32, %arg1: i32, %arg2: i32) -> (i32, i32, i32) {
    %c0_i32 = arith.constant 0 : i32
    %c0_i32_0 = arith.constant 0 : i32
    return %arg0, %c0_i32, %arg2 : i32, i32, i32
  }
  func.func @transform_1(%arg0: i32, %arg1: i32, %arg2: i32) -> (i32, i32, i32) {
    %c0_i32 = arith.constant 0 : i32
    %c0_i32_0 = arith.constant 0 : i32
    return %arg0, %arg1, %c0_i32 : i32, i32, i32
  }
  func.func @transform_2(%arg0: i32, %arg1: i32, %arg2: i32) -> (i32, i32, i32) {
    %c0_i32 = arith.constant 0 : i32
    %c0_i32_0 = arith.constant 0 : i32
    return %arg0, %arg1, %c0_i32 : i32, i32, i32
  }
  func.func @transform_3(%arg0: i32, %arg1: i32, %arg2: i32) -> (i32, i32, i32) {
    %c0_i32 = arith.constant 0 : i32
    return %arg0, %arg1, %arg2 : i32, i32, i32
  }
}

</mosaic_0001>

<llo_original>
// kernel: tpu_custom_call.1
$region0: #{tpu_custom_call.1}
  #allocation0 [shape = 'u32[]', space=smem, size = 0x4, offset = 0x4, fixed_abs, tag = 'smem constant byte address 0x4 - core index']
  #allocation1 [shape = 'u32[144,128]{1,0:T(1,128)}', space=vmem, size = 0x12000, scoped, tag = 'internal scratch']
  %s0 = inlined_call_operand.hbm [shape: f32[2,32,256], index: 0, kind: input, shape index: {}]
  %s1 = inlined_call_operand.vmem [shape: f32[2,8,32], index: 1, kind: input, shape index: {}]
  %s2 = inlined_call_operand.vmem [shape: f32[2,8,1], index: 2, kind: input, shape index: {}]
  %s3 = inlined_call_operand.hbm [shape: f32[2,8,256], index: 3, kind: output, shape index: {}]
  %s4 = sld [smem:[#allocation0]]
  $region49: #{tpu_custom_call.1} parent=0
    _
  %s6 = ssub.s32 1, %s4
  %s7 = scalar_select 0, %s6, %s4
  $region1: #{tpu_custom_call.1} parent=0
    #allocation2 [shape = 'u8[65536]{0}', space=vmem, size = 0x10000, scoped, tag = 'input window, operand 0']
    #allocation3 [shape = 's32[2]{0}', space=sflag, size = 0x8, scoped, tag = 'scoped memory for tpu_custom_call.1']
    #allocation4 [shape = 's32[2]{0}', space=sflag, size = 0x8, scoped, tag = 'scoped memory for tpu_custom_call.1']
    #allocation5 [shape = 'u8[16384]{0}', space=vmem, size = 0x4000, scoped, tag = 'output window, operand 0']
    %8 = vsyncpa [#allocation3], 0
    %s9 = scalar_lea.sflag [#allocation3], 1
    %10 = vsyncpa %s9, 0
    %11 = vsyncpa [#allocation4], 0
    %s12 = scalar_lea.sflag [#allocation4], 1
    %13 = vsyncpa %s12, 0
    loop: start=0, step=1, limit=4
    $region2: #{tpu_custom_call.1} parent=1 // loop_pre_header
      _
    $region3: #{tpu_custom_call.1} parent=1 // loop_header
      %s15 = sphi 0, %s19
      %p16 = scmp.ge.s32.totalorder %s15, 4
      %s22 = sphi 0, %s41
      %s23 = sphi 0, %s37
      %s24 = sphi 0, %s33
      %s25 = sphi 0, %s22
      %s26 = sphi 0, %s23
      %s27 = sphi 0, %s24
      %s28 = sphi 0, %s25
      %s29 = sphi 0, %s26
      %s30 = sphi 0, %s27
      %s46 = sphi 0, %s48
      %s49 = sphi 0, %s46
      %s50 = sphi 0, %s49
      %s66 = sphi 0, %s50
      %s74 = sphi 0, %s76
      %s77 = sphi 0, %s74
      %s78 = sphi 0, %s77
      %s94 = sphi 0, %s78
      %s102 = sphi 0, %s104
      %s105 = sphi 0, %s102
      %s106 = sphi 0, %s105
      %s122 = sphi 0, %s106
      %s132 = sphi 0, %s134
      %s135 = sphi 0, %s132
      %s136 = sphi 0, %s135
      %s152 = sphi 0, %s136
    $region4: #{tpu_custom_call.1} parent=1 // loop_header_branch
      %18 = sbr.rel (%p16) target = $region8
    $region5: #{tpu_custom_call.1} parent=1 // loop_body
      %s20 = ssub.s32 %s15, 1
      %s21 = ssub.s32 %s15, 2
      %s31 = sadd.s32 1, %s24
      %p32 = scmp.ge.s32.totalorder %s31, 1
      %s33 = scalar_select %p32, 0, %s31
      %s34 = sadd.s32 1, %s23
      %s35 = scalar_select %p32, %s34, %s23
      %p36 = scmp.ge.s32.totalorder %s35, 1
      %s37 = scalar_select %p36, 0, %s35
      %s38 = sadd.s32 1, %s22
      %s39 = scalar_select %p36, %s38, %s22
      %p40 = scmp.ge.s32.totalorder %s39, 2
      %s41 = scalar_select %p40, 0, %s39
      %s42 = ssub.s32 %s22, %s41
      %s43 = ssub.s32 %s24, %s33
      %s44 = sor.u32 %s42, %s43
      %p45 = scmp.eq.s32.totalorder %s44, 0
      %s47 = sadd.s32 %s46, 1
      %s48 = scalar_select %p45, %s46, %s47
      %p51 = pneg %p45
      %p52 = scmp.eq.s32.totalorder %s15, 1
      %p53 = por %p51, %p52
      %p54 = scmp.ne.s32.totalorder %s46, %s49
      %p55 = scmp.eq.s32.totalorder %s15, 0
      %p56 = por %p54, %p55
      %p57 = scmp.ne.s32.totalorder %s46, %s49
      %p58 = scmp.eq.s32.totalorder %s20, 1
      %p59 = por %p57, %p58
      %p60 = scmp.ne.s32.totalorder %s49, %s50
      %p61 = scmp.eq.s32.totalorder %s20, 0
      %p62 = por %p60, %p61
      %p63 = scmp.ne.s32.totalorder %s49, %s50
      %p64 = scmp.eq.s32.totalorder %s21, 1
      %p65 = por %p63, %p64
      %p67 = scmp.ne.s32.totalorder %s50, %s66
      %p68 = scmp.eq.s32.totalorder %s21, 0
      %p69 = por %p67, %p68
      %s70 = ssub.s32 %s22, %s41
      %s71 = ssub.s32 %s23, %s37
      %s72 = sor.u32 %s70, %s71
      %p73 = scmp.eq.s32.totalorder %s72, 0
      %s75 = sadd.s32 %s74, 1
      %s76 = scalar_select %p73, %s74, %s75
      %p79 = pneg %p73
      %p80 = scmp.eq.s32.totalorder %s15, 1
      %p81 = por %p79, %p80
      %p82 = scmp.ne.s32.totalorder %s74, %s77
      %p83 = scmp.eq.s32.totalorder %s15, 0
      %p84 = por %p82, %p83
      %p85 = scmp.ne.s32.totalorder %s74, %s77
      %p86 = scmp.eq.s32.totalorder %s20, 1
      %p87 = por %p85, %p86
      %p88 = scmp.ne.s32.totalorder %s77, %s78
      %p89 = scmp.eq.s32.totalorder %s20, 0
      %p90 = por %p88, %p89
      %p91 = scmp.ne.s32.totalorder %s77, %s78
      %p92 = scmp.eq.s32.totalorder %s21, 1
      %p93 = por %p91, %p92
      %p95 = scmp.ne.s32.totalorder %s78, %s94
      %p96 = scmp.eq.s32.totalorder %s21, 0
      %p97 = por %p95, %p96
      %s98 = ssub.s32 %s22, %s41
      %s99 = ssub.s32 %s23, %s37
      %s100 = sor.u32 %s98, %s99
      %p101 = scmp.eq.s32.totalorder %s100, 0
      %s103 = sadd.s32 %s102, 1
      %s104 = scalar_select %p101, %s102, %s103
      %p107 = pneg %p101
      %p108 = scmp.eq.s32.totalorder %s15, 1
      %p109 = por %p107, %p108
      %p110 = scmp.ne.s32.totalorder %s102, %s105
      %p111 = scmp.eq.s32.totalorder %s15, 0
      %p112 = por %p110, %p111
      %p113 = scmp.ne.s32.totalorder %s102, %s105
      %p114 = scmp.eq.s32.totalorder %s20, 1
      %p115 = por %p113, %p114
      %p116 = scmp.ne.s32.totalorder %s105, %s106
      %p117 = scmp.eq.s32.totalorder %s20, 0
      %p118 = por %p116, %p117
      %p119 = scmp.ne.s32.totalorder %s105, %s106
      %p120 = scmp.eq.s32.totalorder %s21, 1
      %p121 = por %p119, %p120
      %p123 = scmp.ne.s32.totalorder %s106, %s122
      %p124 = scmp.eq.s32.totalorder %s21, 0
      %p125 = por %p123, %p124
      %s126 = ssub.s32 %s22, %s41
      %s127 = ssub.s32 %s23, %s37
      %s128 = sor.u32 %s126, %s127
      %s129 = ssub.s32 %s24, %s33
      %s130 = sor.u32 %s128, %s129
      %p131 = scmp.eq.s32.totalorder %s130, 0
      %s133 = sadd.s32 %s132, 1
      %s134 = scalar_select %p131, %s132, %s133
      %p137 = pneg %p131
      %p138 = scmp.eq.s32.totalorder %s15, 1
      %p139 = por %p137, %p138
      %p140 = scmp.ne.s32.totalorder %s132, %s135
      %p141 = scmp.eq.s32.totalorder %s15, 0
      %p142 = por %p140, %p141
      %p143 = scmp.ne.s32.totalorder %s132, %s135
      %p144 = scmp.eq.s32.totalorder %s20, 1
      %p145 = por %p143, %p144
      %p146 = scmp.ne.s32.totalorder %s135, %s136
      %p147 = scmp.eq.s32.totalorder %s20, 0
      %p148 = por %p146, %p147
      %p149 = scmp.ne.s32.totalorder %s135, %s136
      %p150 = scmp.eq.s32.totalorder %s21, 1
      %p151 = por %p149, %p150
      %p153 = scmp.ne.s32.totalorder %s136, %s152
      %p154 = scmp.eq.s32.totalorder %s21, 0
      %p155 = por %p153, %p154
      %p156 = scmp.le.s32.totalorder 1, %s15
      %p157 = scmp.lt.s32.totalorder %s15, 3
      %p158 = pnand %p156, %p157
      %p159 = pneg %p158
      // Predicated region
      $region9: #{tpu_custom_call.1} parent=5 // pred_check
        _
      $region10: #{tpu_custom_call.1} parent=5 // pred_check_branch
        %161 = sbr.rel (%p158) target = $region12
      $region11: #{tpu_custom_call.1} parent=5 // pred_region
        %s162 = ssub.s32 %s15, 1
      $region12: #{tpu_custom_call.1} parent=5 // pred_fallthru
        _
      %p163 = scmp.lt.s32.totalorder %s15, 2
      // Predicated region
      $region13: #{tpu_custom_call.1} parent=5 // pred_check
        %p164 = pneg %p163
      $region14: #{tpu_custom_call.1} parent=5 // pred_check_branch
        %166 = sbr.rel (%p164) target = $region16
      $region15: #{tpu_custom_call.1} parent=5 // pred_region
        // Predicated region
        $region17: #{tpu_custom_call.1} parent=15 // pred_check
          %p167 = pneg %p56
        $region18: #{tpu_custom_call.1} parent=15 // pred_check_branch
          %169 = sbr.rel (%p167) target = $region20
        $region19: #{tpu_custom_call.1} parent=15 // pred_region
          %s170 = sand.u32 %s46, 1
          %s171 = scalar_lea.sflag [#allocation3], %s170
          %s172 = sand.u32 %s46, 1
          %s173 = smul.addr %s172, 64
          %s174 = scalar_lea.vmem [#allocation2], %s173
          %s175 = smul.u32 2, %s24
          %s177 = ssub.s32 1024, 1024
          %178 = vsyncadd %s171, %s177
          %s179 = smul.addr %s22, 8
          %s180 = sadd.s32 %s175, %s179
          %s181 = smul.addr %s180, 128
          %s182 = scalar_lea.hbm %s0, %s181
          %s183 = sshll.u32 %s174, 4
          %s184 = int_to_ptr.vmem [resolvable:$true] %s183
          %189 = dma.hbm_to_vmem [thread:$0]  %s182, 1024, %s184, %s171, 256, 256, 16
        $region20: #{tpu_custom_call.1} parent=15 // pred_fallthru
          _
        // Predicated region
        $region21: #{tpu_custom_call.1} parent=15 // pred_check
          %p190 = pneg %p84
        $region22: #{tpu_custom_call.1} parent=15 // pred_check_branch
          %192 = sbr.rel (%p190) target = $region24
        $region23: #{tpu_custom_call.1} parent=15 // pred_region
          %p193 = scmp.lt.s32.totalorder %s22, 1
          %s194 = scalar_select %p193, %s22, 1
          %p195 = scmp.lt.s32.totalorder %s23, 0
          %s196 = scalar_select %p195, %s23, 0
          %s197 = sadd.s32 %s196, %s194
          %s198 = smul.addr %s197, 8
          %s199 = scalar_lea.vmem %s1, %s198
        $region24: #{tpu_custom_call.1} parent=15 // pred_fallthru
          _
        // Predicated region
        $region25: #{tpu_custom_call.1} parent=15 // pred_check
          %p200 = pneg %p112
        $region26: #{tpu_custom_call.1} parent=15 // pred_check_branch
          %202 = sbr.rel (%p200) target = $region28
        $region27: #{tpu_custom_call.1} parent=15 // pred_region
          %p203 = scmp.lt.s32.totalorder %s22, 1
          %s204 = scalar_select %p203, %s22, 1
          %p205 = scmp.lt.s32.totalorder %s23, 0
          %s206 = scalar_select %p205, %s23, 0
          %s207 = sadd.s32 %s206, %s204
          %s208 = smul.addr %s207, 8
          %s209 = scalar_lea.vmem %s2, %s208
        $region28: #{tpu_custom_call.1} parent=15 // pred_fallthru
          _
      $region16: #{tpu_custom_call.1} parent=5 // pred_fallthru
        _
      %p210 = scmp.le.s32.totalorder 1, %s15
      %p211 = scmp.lt.s32.totalorder %s15, 3
      %p212 = pnand %p210, %p211
      %p213 = pneg %p212
      // Predicated region
      $region29: #{tpu_custom_call.1} parent=5 // pred_check
        _
      $region30: #{tpu_custom_call.1} parent=5 // pred_check_branch
        %215 = sbr.rel (%p212) target = $region32
      $region31: #{tpu_custom_call.1} parent=5 // pred_region
        %s216 = ssub.s32 %s15, 1
        %s217 = sand.u32 %s49, 1
        %s218 = scalar_lea.sflag [#allocation3], %s217
        %s219 = sand.u32 %s49, 1
        %s220 = smul.addr %s219, 64
        %s221 = scalar_lea.vmem [#allocation2], %s220
        // Predicated region
        $region33: #{tpu_custom_call.1} parent=31 // pred_check
          %p222 = pneg %p62
        $region34: #{tpu_custom_call.1} parent=31 // pred_check_branch
          %224 = sbr.rel (%p222) target = $region36
        $region35: #{tpu_custom_call.1} parent=31 // pred_region
          %225 = dma.done %s218, 1024
        $region36: #{tpu_custom_call.1} parent=31 // pred_fallthru
          _
        %s226 = sand.u32 %s49, 1
        %s227 = scalar_lea.sflag [#allocation3], %s226
        %s228 = sand.u32 %s49, 1
        %s229 = smul.addr %s228, 64
        %s230 = scalar_lea.vmem [#allocation2], %s229
        %p231 = pneg %p62
        %p232 = pneg %p59
        %p233 = scmp.lt.s32.totalorder %s25, 1
        %s234 = scalar_select %p233, %s25, 1
        %p235 = scmp.lt.s32.totalorder %s26, 0
        %s236 = scalar_select %p235, %s26, 0
        %s237 = sadd.s32 %s236, %s234
        %s238 = smul.addr %s237, 8
        %s239 = scalar_lea.vmem %s1, %s238
        %p240 = pneg %p90
        %p241 = pneg %p87
        %p242 = scmp.lt.s32.totalorder %s25, 1
        %s243 = scalar_select %p242, %s25, 1
        %p244 = scmp.lt.s32.totalorder %s26, 0
        %s245 = scalar_select %p244, %s26, 0
        %s246 = sadd.s32 %s245, %s243
        %s247 = smul.addr %s246, 8
        %s248 = scalar_lea.vmem %s2, %s247
        %p249 = pneg %p118
        %p250 = pneg %p115
        %p251 = pneg %p148
        %p252 = pneg %p145
        %s253 = sand.u32 %s135, 1
        %s254 = scalar_lea.sflag [#allocation4], %s253
        %s255 = sand.u32 %s135, 1
        %s256 = smul.addr %s255, 16
        %s257 = scalar_lea.vmem [#allocation5], %s256
        %s258 = smul.u32 2, %s27
        %p259 = scmp.lt.s32.totalorder %s25, 1
        %s260 = scalar_select %p259, %s25, 1
        %p261 = scmp.lt.s32.totalorder %s26, 0
        %s262 = scalar_select %p261, %s26, 0
        %s263 = sadd.s32 %s262, %s260
        %s264 = smul.addr %s263, 8
        %s265 = scalar_lea.vmem %s1, %s264
        %p266 = scmp.lt.s32.totalorder %s25, 1
        %s267 = scalar_select %p266, %s25, 1
        %p268 = scmp.lt.s32.totalorder %s26, 0
        %s269 = scalar_select %p268, %s26, 0
        %s270 = sadd.s32 %s269, %s267
        %s271 = smul.addr %s270, 8
        %s272 = scalar_lea.vmem %s2, %s271
        %s273 = smul.u32 2, %s27
        %v274 = vld [vmem:[%s265] sm:$0xff]
        %v275 = vld [vmem:[%s221] sm:$0xff]
        %v276 = vld [vmem:[%s221 + $0x8] sm:$0xff]
        %v277 = vld [vmem:[%s221 + $0x10] sm:$0xff]
        %v278 = vld [vmem:[%s221 + $0x18] sm:$0xff]
        %v279 = vld [vmem:[%s221 + $0x20] sm:$0xff]
        %v280 = vld [vmem:[%s221 + $0x28] sm:$0xff]
        %v281 = vld [vmem:[%s221 + $0x30] sm:$0xff]
        %v282 = vld [vmem:[%s221 + $0x38] sm:$0xff]
        %v283 = vld [vmem:[%s272] sm:$0xff]
        %285 = vset.pattern.permute.xlu0 0
        %286 = vperm.xlu0 %285, %v283
        %v287 = vpop.permute.xlu0 %286
        %vm289 = vcmask 261120
        %v291 = vsel %vm289, %v274, 0
        %293 = vmatprep.subr.mxu0 %v276
        %294 = vmatpush1.msra.mxu0 %v275
        %295 = vmatprep.subr.mxu0 %v278
        %296 = vmatpush1.msra.mxu0 %v277
        %297 = vmatprep.subr.mxu0 %v280
        %298 = vmatpush1.msra.mxu0 %v279
        %299 = vmatprep.subr.mxu0 %v282
        %300 = vmatpush1.msra.mxu0 %v281
        %301 = vmatprep.subr.mxu0 0.0
        %302 = vmatpush1.msra.mxu0 0.0
        %303 = vmatprep.subr.mxu0 0.0
        %304 = vmatpush1.msra.mxu0 0.0
        %305 = vmatprep.subr.mxu0 0.0
        %306 = vmatpush1.msra.mxu0 0.0
        %307 = vmatprep.subr.mxu0 0.0
        %308 = vmatpush1.msra.mxu0 0.0
        %309 = vmatprep.subr.mxu0 0.0
        %310 = vmatpush1.msra.mxu0 0.0
        %311 = vmatprep.subr.mxu0 0.0
        %312 = vmatpush1.msra.mxu0 0.0
        %313 = vmatprep.subr.mxu0 0.0
        %314 = vmatpush1.msra.mxu0 0.0
        %315 = vmatprep.subr.mxu0 0.0
        %316 = vmatpush1.msra.mxu0 0.0
        %317 = vmatprep.subr.mxu0 0.0
        %318 = vmatpush1.msra.mxu0 0.0
        %319 = vmatprep.subr.mxu0 0.0
        %320 = vmatpush1.msra.mxu0 0.0
        %321 = vmatprep.subr.mxu0 0.0
        %322 = vmatpush1.msra.mxu0 0.0
        %323 = vmatprep.subr.mxu0 0.0
        %324 = vmatpush1.msra.mxu0 0.0
        %325 = vmatprep.subr.mxu0 0.0
        %326 = vmatpush1.msra.mxu0 0.0
        %327 = vmatprep.subr.mxu0 0.0
        %328 = vmatpush1.msra.mxu0 0.0
        %329 = vmatprep.subr.mxu0 0.0
        %330 = vmatpush1.msra.mxu0 0.0
        %331 = vmatprep.subr.mxu0 0.0
        %332 = vmatpush1.msra.mxu0 0.0
        %333 = vmatprep.subr.mxu0 0.0
        %334 = vmatpush1.msra.mxu0 0.0
        %335 = vmatprep.subr.mxu0 0.0
        %336 = vmatpush1.msra.mxu0 0.0
        %337 = vmatprep.subr.mxu0 0.0
        %338 = vmatpush1.msra.mxu0 0.0
        %339 = vmatprep.subr.mxu0 0.0
        %340 = vmatpush1.msra.mxu0 0.0
        %341 = vmatprep.subr.mxu0 0.0
        %342 = vmatpush1.msra.mxu0 0.0
        %343 = vmatprep.subr.mxu0 0.0
        %344 = vmatpush1.msra.mxu0 0.0
        %345 = vmatprep.subr.mxu0 0.0
        %346 = vmatpush1.msra.mxu0 0.0
        %347 = vmatprep.subr.mxu0 0.0
        %348 = vmatpush1.msra.mxu0 0.0
        %349 = vmatprep.subr.mxu0 0.0
        %350 = vmatpush1.msra.mxu0 0.0
        %351 = vmatprep.subr.mxu0 0.0
        %352 = vmatpush1.msra.mxu0 0.0
        %353 = vmatprep.subr.mxu0 0.0
        %354 = vmatpush1.msra.mxu0 0.0
        %355 = vmatprep.subr.mxu0 0.0
        %356 = vmatpush1.msra.mxu0 0.0
        %357 = vmatprep.mubr.f32.mxu0 0.0
        %358 = vmatmul.mubr.f32.gmra.mrb[0].mxu0 %v291
        %v359 = vpop.f32.mrb[0].mxu0
        %v360 = vadd.f32 %v287, %v359
        %v361 = vpop.f32.mrb[0].mxu0
        %v362 = vadd.f32 %v287, %v361
        %363 = vdwg.mxu0
        %364 = vst [vmem:[%s257] sm:$0xff] %v360
        %365 = vst [vmem:[%s257 + $0x8] sm:$0xff] %v362
        %s366 = sand.u32 %s135, 1
        %s367 = scalar_lea.sflag [#allocation4], %s366
        %s368 = sand.u32 %s135, 1
        %s369 = smul.addr %s368, 16
        %s370 = scalar_lea.vmem [#allocation5], %s369
        // Predicated region
        $region37: #{tpu_custom_call.1} parent=31 // pred_check
          %p371 = pneg %p145
        $region38: #{tpu_custom_call.1} parent=31 // pred_check_branch
          %373 = sbr.rel (%p371) target = $region40
        $region39: #{tpu_custom_call.1} parent=31 // pred_region
          %s374 = smul.u32 2, %s27
          %s376 = ssub.s32 256, 256
          %377 = vsyncadd %s367, %s376
          %s378 = smul.addr %s26, 2
          %s379 = sadd.s32 %s374, %s378
          %s380 = smul.addr %s25, 2
          %s381 = sadd.s32 %s379, %s380
          %s382 = smul.addr %s381, 128
          %s383 = scalar_lea.hbm %s3, %s382
          %s385 = sshll.u32 %s370, 4
          %s386 = int_to_ptr.vmem [resolvable:$true] %s385
          %388 = dma.vmem_to_hbm [thread:$0]  %s386, 256, %s383, %s367
        $region40: #{tpu_custom_call.1} parent=31 // pred_fallthru
          _
      $region32: #{tpu_custom_call.1} parent=5 // pred_fallthru
        _
      %p389 = scmp.le.s32.totalorder 2, %s15
      // Predicated region
      $region41: #{tpu_custom_call.1} parent=5 // pred_check
        %p390 = pneg %p389
      $region42: #{tpu_custom_call.1} parent=5 // pred_check_branch
        %392 = sbr.rel (%p390) target = $region44
      $region43: #{tpu_custom_call.1} parent=5 // pred_region
        %s393 = ssub.s32 %s15, 2
        // Predicated region
        $region45: #{tpu_custom_call.1} parent=43 // pred_check
          %p394 = pneg %p151
        $region46: #{tpu_custom_call.1} parent=43 // pred_check_branch
          %396 = sbr.rel (%p394) target = $region48
        $region47: #{tpu_custom_call.1} parent=43 // pred_region
          %s397 = sand.u32 %s136, 1
          %s398 = scalar_lea.sflag [#allocation4], %s397
          %s399 = sand.u32 %s136, 1
          %s400 = smul.addr %s399, 16
          %s401 = scalar_lea.vmem [#allocation5], %s400
          %402 = dma.done %s398, 256
        $region48: #{tpu_custom_call.1} parent=43 // pred_fallthru
          _
      $region44: #{tpu_custom_call.1} parent=5 // pred_fallthru
        _
    $region6: #{tpu_custom_call.1} parent=1 // loop_footer
      %s19 = sadd.s32 1, %s15
    $region7: #{tpu_custom_call.1} parent=1 // loop_footer_branch
      %14 = sbr.rel target = $region3
    $region8: #{tpu_custom_call.1} parent=1 // loop_exit
      _
    %403 = vsyncpa [#allocation3], 1
    %s404 = scalar_lea.sflag [#allocation3], 1
    %405 = vsyncpa %s404, 1
    %406 = vsyncpa [#allocation4], 1
    %s407 = scalar_lea.sflag [#allocation4], 1
    %408 = vsyncpa %s407, 1

</llo_original>
